<compile_context>
chip_gen: v5e
topology: v5e:2x2
jax: 0.10.0
libtpu: 0.0.40
codegen_flags: <defaults>
</compile_context>

<pallas_src>
import math

import jax
import jax.numpy as jnp
from jax.experimental import pallas as pl
from jax.experimental.pallas import tpu as pltpu

EPS = 1e-5  # LayerNorm epsilon (PyTorch default)


def _round_up(x: int, m: int) -> int:
    return (x + m - 1) // m * m


def _pair_transition_kernel(z_ref, mask_ref, g_ref, b_ref,
                            w1_ref, b1_ref, w2_ref, b2_ref, o_ref):
    # z_ref:    (tm, c_z)     tile of rows
    # mask_ref: (tm, 1)
    # g_ref/b_ref: (1, c_z)   layer-norm gamma / beta
    # w1_ref: (c_z, hidden), b1_ref: (1, hidden)
    # w2_ref: (hidden, c_z), b2_ref: (1, c_z)

    zf = z_ref[...].astype(jnp.float32)

    # One-pass LayerNorm statistics: both XLU reductions are independent and
    # can issue back-to-back; clamp guards E[x^2]-E[x]^2 cancellation.
    mu = jnp.mean(zf, axis=-1, keepdims=True)
    ex2 = jnp.mean(zf * zf, axis=-1, keepdims=True)
    var = jnp.maximum(ex2 - mu * mu, 0.0)
    inv = jax.lax.rsqrt(var + EPS)
    zn = (zf - mu) * inv
    zn = zn * g_ref[...].astype(jnp.float32) + b_ref[...].astype(jnp.float32)

    # Stage the MXU feeds in the weights' native dtype (bf16 weights ->
    # bf16 VMEM temps + full-rate MXU); accumulate in f32.
    zn = zn.astype(w1_ref.dtype)

    # linear_1 (c_z -> n*c_z) + ReLU
    h = jnp.dot(zn, w1_ref[...], preferred_element_type=jnp.float32)
    h = jnp.maximum(h + b1_ref[...].astype(jnp.float32), 0.0)
    h = h.astype(w2_ref.dtype)

    # linear_2 (n*c_z -> c_z)
    out = jnp.dot(h, w2_ref[...], preferred_element_type=jnp.float32)
    out = out + b2_ref[...].astype(jnp.float32)

    # mask multiply (broadcast over channels), single final downcast.
    out = out * mask_ref[...].astype(jnp.float32)
    o_ref[...] = out.astype(o_ref.dtype)


def pair_transition(z, mask, params, *, tile_rows=2048, out_dtype=None,
                    vmem_limit_bytes=None):
    """z: [*, N_res, N_res, C_z]; mask: [*, N_res, N_res] or None.

    tile_rows is the main perf knob (multiple of 256, sweep 1024..2048).
    Keep C_z a multiple of 128 (128 in production) for lane-dense stores.
    Pass out_dtype=jnp.bfloat16 (and/or bf16 z) for a bf16 I/O path on
    HBM-bound chips; LayerNorm stats and accumulation stay f32 regardless.
    """
    c_z = z.shape[-1]
    hidden = params["w1"].shape[-1]
    lead_shape = z.shape[:-1]
    out_dtype = z.dtype if out_dtype is None else out_dtype

    if mask is None:
        mask = jnp.ones(lead_shape, dtype=z.dtype)

    M = math.prod(lead_shape)
    z2d = z.reshape(M, c_z)
    mask2d = mask.reshape(M, 1)

    # ---- tile selection (no padding) --------------------------------------
    # grid = cdiv(M, tile): Pallas masks the partial last block; all math is
    # row-local so garbage in the out-of-bounds rows never reaches valid
    # output (those rows are simply not written back).
    tile_rows = int(tile_rows)
    # Megacore (v7x): when M is large enough, keep >= ~4 grid steps so the
    # "parallel" row axis splits across both TensorCores.
    if M >= 4 * 256:
        tile_rows = min(tile_rows, _round_up(pl.cdiv(M, 4), 256))
    tile_rows = max(8, min(tile_rows, _round_up(M, 8)))
    tile_rows = _round_up(tile_rows, 8)
    grid = (pl.cdiv(M, tile_rows),)

    # ---- VMEM budget (generation-aware; stay well under v7x's 64 MiB) -----
    act_bytes = z2d.dtype.itemsize
    out_bytes = jnp.dtype(out_dtype).itemsize
    w_bytes = params["w1"].dtype.itemsize
    if vmem_limit_bytes is None:
        io_tile = tile_rows * c_z * max(act_bytes, out_bytes)   # z / out tile
        mask_tile = tile_rows * 128 * act_bytes                 # (tm,1) lanes pad to 128
        weights = (2 * c_z * hidden + hidden + 3 * c_z) * w_bytes
        temps = tile_rows * (3 * c_z * 4 + hidden * (w_bytes + 4)
                             + c_z * w_bytes + 128 * 4)         # staged intermediates
        est = 2 * (2 * io_tile + mask_tile) + 2 * weights + temps
        vmem_limit_bytes = int(min(max(est + (8 << 20), 24 << 20), 48 << 20))

    cost = pl.CostEstimate(
        flops=int(4 * M * c_z * hidden + 10 * M * c_z),
        transcendentals=int(M),
        bytes_accessed=int(M * c_z * (act_bytes + out_bytes)      # z in + out
                           + M * mask2d.dtype.itemsize            # mask
                           + 2 * c_z * hidden * w_bytes           # w1 + w2
                           + (hidden + 3 * c_z) * w_bytes),       # biases, ln
    )

    # Constant-index operands (gamma/beta/biases/weights) stay resident in
    # VMEM across grid steps (constant index_map -> no re-DMA).
    out2d = pl.pallas_call(
        _pair_transition_kernel,
        out_shape=jax.ShapeDtypeStruct((M, c_z), out_dtype),
        grid=grid,
        in_specs=[
            pl.BlockSpec((tile_rows, c_z), lambda i: (i, 0)),   # z tile
            pl.BlockSpec((tile_rows, 1), lambda i: (i, 0)),     # mask tile
            pl.BlockSpec((1, c_z), lambda i: (0, 0)),           # ln gamma
            pl.BlockSpec((1, c_z), lambda i: (0, 0)),           # ln beta
            pl.BlockSpec((c_z, hidden), lambda i: (0, 0)),      # w1
            pl.BlockSpec((1, hidden), lambda i: (0, 0)),        # b1
            pl.BlockSpec((hidden, c_z), lambda i: (0, 0)),      # w2
            pl.BlockSpec((1, c_z), lambda i: (0, 0)),           # b2
        ],
        out_specs=pl.BlockSpec((tile_rows, c_z), lambda i: (i, 0)),
        compiler_params=pltpu.CompilerParams(
            dimension_semantics=("parallel",),
            vmem_limit_bytes=int(vmem_limit_bytes)),
        cost_estimate=cost,
    )(z2d, mask2d, params["ln_g"], params["ln_b"],
      params["w1"], params["b1"], params["w2"], params["b2"])

    return out2d.reshape(*lead_shape, c_z)


def _reference(z, mask, params):
    """Pure-JAX reference of PairTransition.forward for validation."""
    if mask is None:
        mask = jnp.ones(z.shape[:-1], dtype=z.dtype)
    mask = mask[..., None]
    x = z.astype(jnp.float32)
    mu = jnp.mean(x, axis=-1, keepdims=True)
    var = jnp.mean((x - mu) ** 2, axis=-1, keepdims=True)
    x = (x - mu) / jnp.sqrt(var + EPS)
    x = x * params["ln_g"][0] + params["ln_b"][0]
    x = jnp.maximum(x @ params["w1"] + params["b1"][0], 0.0)
    x = x @ params["w2"] + params["b2"][0]
    return (x * mask).astype(z.dtype)


def init_params(key, c_z, n, dtype=jnp.float32):
    hidden = n * c_z
    k1, k2, k3, k4 = jax.random.split(key, 4)
    # Deterministic synthetic init.  NOTE: the real module uses He init for
    # linear_1 ('relu') and zeros for linear_2 ('final'); zeros would make the
    # output trivially 0, so small random weights are used here for a
    # non-trivial numerical check.
    return {
        "ln_g": jnp.ones((1, c_z), dtype),
        "ln_b": jnp.zeros((1, c_z), dtype),
        "w1": (jax.random.normal(k1, (c_z, hidden), jnp.float32)
               * (2.0 / c_z) ** 0.5).astype(dtype),
        "b1": (jax.random.normal(k2, (1, hidden), jnp.float32) * 0.01).astype(dtype),
        "w2": (jax.random.normal(k3, (hidden, c_z), jnp.float32)
               * (1.0 / hidden) ** 0.5).astype(dtype),
        "b2": (jax.random.normal(k4, (1, c_z), jnp.float32) * 0.01).astype(dtype),
    }


if __name__ == "__main__":
    key = jax.random.PRNGKey(0)
    kz, km, kp = jax.random.split(key, 3)

    # Small but representative shapes: c_z=128 keeps output stores lane-dense;
    # n_res=7 makes M = 2*7*7 = 98 rows, exercising the masked partial
    # last-block path (tile clamps to 104 rows, no padding copy).
    batch, n_res, c_z, n = 2, 7, 128, 4   # hidden = 512
    z = jax.random.normal(kz, (batch, n_res, n_res, c_z), jnp.float32)
    mask = (jax.random.uniform(km, (batch, n_res, n_res)) > 0.2).astype(jnp.float32)

    params = init_params(kp, c_z, n)

    out = jax.block_until_ready(pair_transition(z, mask, params))
    ref = _reference(z, mask, params)
    assert out.shape == (batch, n_res, n_res, c_z)
    assert jnp.allclose(out, ref, atol=2e-4, rtol=2e-4), "mismatch vs reference"

    # mask=None path (module defaults the mask to ones).
    out_nm = jax.block_until_ready(pair_transition(z, None, params))
    ref_nm = _reference(z, None, params)
    assert jnp.allclose(out_nm, ref_nm, atol=2e-4, rtol=2e-4), "mismatch (mask=None)"

    print("KERNEL_OK")
</pallas_src>

<mosaic_0001>
module attributes {stable_mosaic.version = 11 : i64} {
  func.func @_pair_transition_kernel(%arg0: i32, %arg1: memref<104x128xf32, #tpu.memory_space<vmem>>, %arg2: memref<104x1xf32, #tpu.memory_space<vmem>>, %arg3: memref<1x128xf32, #tpu.memory_space<vmem>>, %arg4: memref<1x128xf32, #tpu.memory_space<vmem>>, %arg5: memref<128x512xf32, #tpu.memory_space<vmem>>, %arg6: memref<1x512xf32, #tpu.memory_space<vmem>>, %arg7: memref<512x128xf32, #tpu.memory_space<vmem>>, %arg8: memref<1x128xf32, #tpu.memory_space<vmem>>, %arg9: memref<104x128xf32, #tpu.memory_space<vmem>>) attributes {dimension_semantics = [#tpu.dimension_semantics<parallel>], iteration_bounds = array<i64: 1>, scalar_prefetch = 0 : i64, scratch_operands = 0 : i64, tpu.core_type = #tpu.core_type<tc>, window_params = [{transform_indices = @transform_0, window_bounds = array<i64: 104, 128>}, {transform_indices = @transform_1, window_bounds = array<i64: 104, 1>}, {pipeline_mode = #tpu.pipeline_mode<synchronous>, transform_indices = @transform_2, window_bounds = array<i64: 1, 128>}, {pipeline_mode = #tpu.pipeline_mode<synchronous>, transform_indices = @transform_3, window_bounds = array<i64: 1, 128>}, {pipeline_mode = #tpu.pipeline_mode<synchronous>, transform_indices = @transform_4, window_bounds = array<i64: 128, 512>}, {pipeline_mode = #tpu.pipeline_mode<synchronous>, transform_indices = @transform_5, window_bounds = array<i64: 1, 512>}, {pipeline_mode = #tpu.pipeline_mode<synchronous>, transform_indices = @transform_6, window_bounds = array<i64: 512, 128>}, {pipeline_mode = #tpu.pipeline_mode<synchronous>, transform_indices = @transform_7, window_bounds = array<i64: 1, 128>}, {transform_indices = @transform_8, window_bounds = array<i64: 104, 128>}]} {
    %c0 = arith.constant 0 : index
    %c0_0 = arith.constant 0 : index
    %0 = vector.load %arg1[%c0, %c0_0] : memref<104x128xf32, #tpu.memory_space<vmem>>, vector<104x128xf32>
    %cst = arith.constant dense<0.000000e+00> : vector<104xf32>
    %1 = vector.multi_reduction <add>, %0, %cst [1] : vector<104x128xf32> to vector<104xf32>
    %2 = vector.shape_cast %1 : vector<104xf32> to vector<104x1xf32>
    %cst_1 = arith.constant 1.280000e+02 : f32
    %3 = vector.broadcast %cst_1 : f32 to vector<104x1xf32>
    %4 = arith.divf %2, %3 : vector<104x1xf32>
    %5 = arith.mulf %0, %0 : vector<104x128xf32>
    %cst_2 = arith.constant dense<0.000000e+00> : vector<104xf32>
    %6 = vector.multi_reduction <add>, %5, %cst_2 [1] : vector<104x128xf32> to vector<104xf32>
    %7 = vector.shape_cast %6 : vector<104xf32> to vector<104x1xf32>
    %cst_3 = arith.constant 1.280000e+02 : f32
    %8 = vector.broadcast %cst_3 : f32 to vector<104x1xf32>
    %9 = arith.divf %7, %8 : vector<104x1xf32>
    %10 = arith.mulf %4, %4 : vector<104x1xf32>
    %11 = arith.subf %9, %10 : vector<104x1xf32>
    %cst_4 = arith.constant 0.000000e+00 : f32
    %12 = vector.broadcast %cst_4 : f32 to vector<104x1xf32>
    %13 = arith.maximumf %11, %12 : vector<104x1xf32>
    %cst_5 = arith.constant 9.99999974E-6 : f32
    %14 = vector.broadcast %cst_5 : f32 to vector<104x1xf32>
    %15 = arith.addf %13, %14 : vector<104x1xf32>
    %16 = math.rsqrt %15 : vector<104x1xf32>
    %17 = vector.broadcast %4 : vector<104x1xf32> to vector<104x128xf32>
    %18 = arith.subf %0, %17 : vector<104x128xf32>
    %19 = vector.broadcast %16 : vector<104x1xf32> to vector<104x128xf32>
    %20 = arith.mulf %18, %19 : vector<104x128xf32>
    %c0_6 = arith.constant 0 : index
    %c0_7 = arith.constant 0 : index
    %21 = vector.load %arg3[%c0_6, %c0_7] : memref<1x128xf32, #tpu.memory_space<vmem>>, vector<1x128xf32>
    %22 = vector.broadcast %21 : vector<1x128xf32> to vector<104x128xf32>
    %23 = arith.mulf %20, %22 : vector<104x128xf32>
    %c0_8 = arith.constant 0 : index
    %c0_9 = arith.constant 0 : index
    %24 = vector.load %arg4[%c0_8, %c0_9] : memref<1x128xf32, #tpu.memory_space<vmem>>, vector<1x128xf32>
    %25 = vector.broadcast %24 : vector<1x128xf32> to vector<104x128xf32>
    %26 = arith.addf %23, %25 : vector<104x128xf32>
    %c0_10 = arith.constant 0 : index
    %c0_11 = arith.constant 0 : index
    %27 = vector.load %arg5[%c0_10, %c0_11] : memref<128x512xf32, #tpu.memory_space<vmem>>, vector<128x512xf32>
    %cst_12 = arith.constant dense<0.000000e+00> : vector<104x512xf32>
    %28 = tpu.matmul %26, %27, %cst_12 {dimension_numbers = #tpu.dot_dimension_numbers<[1], [0], [0], [1], [0, 0, 1, 1], [], []>} : vector<104x128xf32>, vector<128x512xf32>, vector<104x512xf32> -> vector<104x512xf32>
    %c0_13 = arith.constant 0 : index
    %c0_14 = arith.constant 0 : index
    %29 = vector.load %arg6[%c0_13, %c0_14] : memref<1x512xf32, #tpu.memory_space<vmem>>, vector<1x512xf32>
    %30 = vector.broadcast %29 : vector<1x512xf32> to vector<104x512xf32>
    %31 = arith.addf %28, %30 : vector<104x512xf32>
    %cst_15 = arith.constant 0.000000e+00 : f32
    %32 = vector.broadcast %cst_15 : f32 to vector<104x512xf32>
    %33 = arith.maximumf %31, %32 : vector<104x512xf32>
    %c0_16 = arith.constant 0 : index
    %c0_17 = arith.constant 0 : index
    %34 = vector.load %arg7[%c0_16, %c0_17] : memref<512x128xf32, #tpu.memory_space<vmem>>, vector<512x128xf32>
    %cst_18 = arith.constant dense<0.000000e+00> : vector<104x128xf32>
    %35 = tpu.matmul %33, %34, %cst_18 {dimension_numbers = #tpu.dot_dimension_numbers<[1], [0], [0], [1], [0, 0, 1, 1], [], []>} : vector<104x512xf32>, vector<512x128xf32>, vector<104x128xf32> -> vector<104x128xf32>
    %c0_19 = arith.constant 0 : index
    %c0_20 = arith.constant 0 : index
    %36 = vector.load %arg8[%c0_19, %c0_20] : memref<1x128xf32, #tpu.memory_space<vmem>>, vector<1x128xf32>
    %37 = vector.broadcast %36 : vector<1x128xf32> to vector<104x128xf32>
    %38 = arith.addf %35, %37 : vector<104x128xf32>
    %c0_21 = arith.constant 0 : index
    %c0_22 = arith.constant 0 : index
    %39 = vector.load %arg2[%c0_21, %c0_22] : memref<104x1xf32, #tpu.memory_space<vmem>>, vector<104x1xf32>
    %40 = vector.broadcast %39 : vector<104x1xf32> to vector<104x128xf32>
    %41 = arith.mulf %38, %40 : vector<104x128xf32>
    %c0_23 = arith.constant 0 : index
    %c0_24 = arith.constant 0 : index
    %42 = vector.load %arg9[%c0_23, %c0_24] : memref<104x128xf32, #tpu.memory_space<vmem>>, vector<104x128xf32>
    tpu.vector_store %arg9[%c0_23, %c0_24], %41 {strides = array<i32>} : memref<104x128xf32, #tpu.memory_space<vmem>>, vector<104x128xf32>,
    return
  }
  func.func @transform_0(%arg0: i32) -> (i32, i32) {
    %c0_i32 = arith.constant 0 : i32
    %c0_i32_0 = arith.constant 0 : i32
    return %arg0, %c0_i32 : i32, i32
  }
  func.func @transform_1(%arg0: i32) -> (i32, i32) {
    %c0_i32 = arith.constant 0 : i32
    %c0_i32_0 = arith.constant 0 : i32
    return %arg0, %c0_i32 : i32, i32
  }
  func.func @transform_2(%arg0: i32) -> (i32, i32) {
    %c0_i32 = arith.constant 0 : i32
    %c0_i32_0 = arith.constant 0 : i32
    %c0_i32_1 = arith.constant 0 : i32
    return %c0_i32, %c0_i32_0 : i32, i32
  }
  func.func @transform_3(%arg0: i32) -> (i32, i32) {
    %c0_i32 = arith.constant 0 : i32
    %c0_i32_0 = arith.constant 0 : i32
    %c0_i32_1 = arith.constant 0 : i32
    return %c0_i32, %c0_i32_0 : i32, i32
  }
  func.func @transform_4(%arg0: i32) -> (i32, i32) {
    %c0_i32 = arith.constant 0 : i32
    %c0_i32_0 = arith.constant 0 : i32
    %c0_i32_1 = arith.constant 0 : i32
    return %c0_i32, %c0_i32_0 : i32, i32
  }
  func.func @transform_5(%arg0: i32) -> (i32, i32) {
    %c0_i32 = arith.constant 0 : i32
    %c0_i32_0 = arith.constant 0 : i32
    %c0_i32_1 = arith.constant 0 : i32
    return %c0_i32, %c0_i32_0 : i32, i32
  }
  func.func @transform_6(%arg0: i32) -> (i32, i32) {
    %c0_i32 = arith.constant 0 : i32
    %c0_i32_0 = arith.constant 0 : i32
    %c0_i32_1 = arith.constant 0 : i32
    return %c0_i32, %c0_i32_0 : i32, i32
  }
  func.func @transform_7(%arg0: i32) -> (i32, i32) {
    %c0_i32 = arith.constant 0 : i32
    %c0_i32_0 = arith.constant 0 : i32
    %c0_i32_1 = arith.constant 0 : i32
    return %c0_i32, %c0_i32_0 : i32, i32
  }
  func.func @transform_8(%arg0: i32) -> (i32, i32) {
    %c0_i32 = arith.constant 0 : i32
    %c0_i32_0 = arith.constant 0 : i32
    return %arg0, %c0_i32 : i32, i32
  }
}

</mosaic_0001>

<llo_original>
// kernel: tpu_custom_call.1
$region0: #{tpu_custom_call.1}
  #allocation0 [shape = 'u32[]', space=smem, size = 0x4, offset = 0x4, fixed_abs, tag = 'smem constant byte address 0x4 - core index']
  #allocation1 [shape = 'u32[72,128]{1,0:T(1,128)}', space=vmem, size = 0x9000, scoped, tag = 'internal scratch']
  %s0 = inlined_call_operand.vmem [shape: f32[98,128], index: 0, kind: input, shape index: {}]
  %s1 = inlined_call_operand.vmem [shape: f32[98,1], index: 1, kind: input, shape index: {}]
  %s2 = inlined_call_operand.hbm [shape: f32[1,128], index: 2, kind: input, shape index: {}]
  %s3 = inlined_call_operand.hbm [shape: f32[1,128], index: 3, kind: input, shape index: {}]
  %s4 = inlined_call_operand.hbm [shape: f32[128,512], index: 4, kind: input, shape index: {}]
  %s5 = inlined_call_operand.vmem [shape: f32[1,512], index: 5, kind: input, shape index: {}]
  %s6 = inlined_call_operand.hbm [shape: f32[512,128], index: 6, kind: input, shape index: {}]
  %s7 = inlined_call_operand.vmem [shape: f32[1,128], index: 7, kind: input, shape index: {}]
  %s8 = inlined_call_operand.hbm [shape: f32[98,128], index: 8, kind: output, shape index: {}]
  %s9 = sld [smem:[#allocation0]]
  $region58: #{tpu_custom_call.1} parent=0
    _
  %s11 = ssub.s32 1, %s9
  %s12 = scalar_select 0, %s11, %s9
  $region1: #{tpu_custom_call.1} parent=0
    #allocation2 [shape = 'u8[512]{0}', space=vmem, size = 0x400, scoped, tag = 'input window, operand 2, single buffered']
    #allocation3 [shape = 's32[1]{0}', space=sflag, size = 0x4, scoped, tag = 'scoped memory for tpu_custom_call.1']
    #allocation4 [shape = 's32[1]{0}', space=sflag, size = 0x4, scoped, tag = 'scoped memory for tpu_custom_call.1']
    #allocation5 [shape = 'u8[512]{0}', space=vmem, size = 0x400, scoped, tag = 'input window, operand 3, single buffered']
    #allocation6 [shape = 's32[1]{0}', space=sflag, size = 0x4, scoped, tag = 'scoped memory for tpu_custom_call.1']
    #allocation7 [shape = 'u8[262144]{0}', space=vmem, size = 0x40000, scoped, tag = 'input window, operand 4, single buffered']
    #allocation8 [shape = 'u8[262144]{0}', space=vmem, size = 0x40000, scoped, tag = 'input window, operand 6, single buffered']
    #allocation9 [shape = 's32[1]{0}', space=sflag, size = 0x4, scoped, tag = 'scoped memory for tpu_custom_call.1']
    #allocation10 [shape = 'u8[53248]{0}', space=vmem, size = 0xd000, scoped, tag = 'output window, operand 0, single buffered']
    %13 = vsyncpa [#allocation3], 0
    %14 = vsyncpa [#allocation6], 0
    %15 = vsyncpa [#allocation9], 0
    %16 = vsyncpa [#allocation4], 0
    // Predicated region
    $region2: #{tpu_custom_call.1} parent=1 // pred_check
      _
    $region3: #{tpu_custom_call.1} parent=1 // pred_check_branch
      %18 = sbr.rel (0) target = $region5
    $region4: #{tpu_custom_call.1} parent=1 // pred_region
      _
    $region5: #{tpu_custom_call.1} parent=1 // pred_fallthru
      _
    // Predicated region
    $region6: #{tpu_custom_call.1} parent=1 // pred_check
      _
    $region7: #{tpu_custom_call.1} parent=1 // pred_check_branch
      %20 = sbr.rel (0) target = $region9
    $region8: #{tpu_custom_call.1} parent=1 // pred_region
      _
    $region9: #{tpu_custom_call.1} parent=1 // pred_fallthru
      _
    // Predicated region
    $region10: #{tpu_custom_call.1} parent=1 // pred_check
      _
    $region11: #{tpu_custom_call.1} parent=1 // pred_check_branch
      %22 = sbr.rel (0) target = $region13
    $region12: #{tpu_custom_call.1} parent=1 // pred_region
      %24 = vsyncadd [#allocation3], 0
      %s26 = sshll.u32 %s2, 4
      %s27 = int_to_ptr.hbm [resolvable:$true] %s26
      %s28 = sshll.u32 [#allocation2], 4
      %s29 = int_to_ptr.vmem [resolvable:$true] %s28
      %31 = dma.hbm_to_vmem [thread:$0]  %s27, 16, %s29, [#allocation3]
    $region13: #{tpu_custom_call.1} parent=1 // pred_fallthru
      _
    // Predicated region
    $region14: #{tpu_custom_call.1} parent=1 // pred_check
      _
    $region15: #{tpu_custom_call.1} parent=1 // pred_check_branch
      %33 = sbr.rel (0) target = $region17
    $region16: #{tpu_custom_call.1} parent=1 // pred_region
      %35 = vsyncadd [#allocation6], 0
      %s37 = sshll.u32 %s3, 4
      %s38 = int_to_ptr.hbm [resolvable:$true] %s37
      %s39 = sshll.u32 [#allocation5], 4
      %s40 = int_to_ptr.vmem [resolvable:$true] %s39
      %42 = dma.hbm_to_vmem [thread:$0]  %s38, 16, %s40, [#allocation6]
    $region17: #{tpu_custom_call.1} parent=1 // pred_fallthru
      _
    // Predicated region
    $region18: #{tpu_custom_call.1} parent=1 // pred_check
      _
    $region19: #{tpu_custom_call.1} parent=1 // pred_check_branch
      %44 = sbr.rel (0) target = $region21
    $region20: #{tpu_custom_call.1} parent=1 // pred_region
      %46 = vsyncadd [#allocation6], 0
      %s47 = sshll.u32 %s4, 4
      %s48 = int_to_ptr.hbm [resolvable:$true] %s47
      %s49 = sshll.u32 [#allocation7], 4
      %s50 = int_to_ptr.vmem [resolvable:$true] %s49
      %55 = dma.hbm_to_vmem [thread:$0]  %s48, 8192, %s50, [#allocation6], 512, 512, 32
    $region21: #{tpu_custom_call.1} parent=1 // pred_fallthru
      _
    // Predicated region
    $region22: #{tpu_custom_call.1} parent=1 // pred_check
      _
    $region23: #{tpu_custom_call.1} parent=1 // pred_check_branch
      %57 = sbr.rel (0) target = $region25
    $region24: #{tpu_custom_call.1} parent=1 // pred_region
      _
    $region25: #{tpu_custom_call.1} parent=1 // pred_fallthru
      _
    // Predicated region
    $region26: #{tpu_custom_call.1} parent=1 // pred_check
      _
    $region27: #{tpu_custom_call.1} parent=1 // pred_check_branch
      %59 = sbr.rel (0) target = $region29
    $region28: #{tpu_custom_call.1} parent=1 // pred_region
      %61 = vsyncadd [#allocation9], 0
      %s62 = sshll.u32 %s6, 4
      %s63 = int_to_ptr.hbm [resolvable:$true] %s62
      %s64 = sshll.u32 [#allocation8], 4
      %s65 = int_to_ptr.vmem [resolvable:$true] %s64
      %70 = dma.hbm_to_vmem [thread:$0]  %s63, 8192, %s65, [#allocation9], 128, 128, 8
    $region29: #{tpu_custom_call.1} parent=1 // pred_fallthru
      _
    // Predicated region
    $region30: #{tpu_custom_call.1} parent=1 // pred_check
      _
    $region31: #{tpu_custom_call.1} parent=1 // pred_check_branch
      %72 = sbr.rel (0) target = $region33
    $region32: #{tpu_custom_call.1} parent=1 // pred_region
      _
    $region33: #{tpu_custom_call.1} parent=1 // pred_fallthru
      _
    // Predicated region
    $region34: #{tpu_custom_call.1} parent=1 // pred_check
      _
    $region35: #{tpu_custom_call.1} parent=1 // pred_check_branch
      %74 = sbr.rel (0) target = $region37
    $region36: #{tpu_custom_call.1} parent=1 // pred_region
      %76 = dma.done [#allocation3], 16
    $region37: #{tpu_custom_call.1} parent=1 // pred_fallthru
      _
    // Predicated region
    $region38: #{tpu_custom_call.1} parent=1 // pred_check
      _
    $region39: #{tpu_custom_call.1} parent=1 // pred_check_branch
      %78 = sbr.rel (0) target = $region41
    $region40: #{tpu_custom_call.1} parent=1 // pred_region
      %80 = dma.done [#allocation6], 16
    $region41: #{tpu_custom_call.1} parent=1 // pred_fallthru
      _
    // Predicated region
    $region42: #{tpu_custom_call.1} parent=1 // pred_check
      _
    $region43: #{tpu_custom_call.1} parent=1 // pred_check_branch
      %82 = sbr.rel (0) target = $region45
    $region44: #{tpu_custom_call.1} parent=1 // pred_region
      %84 = dma.done [#allocation6], 8192
    $region45: #{tpu_custom_call.1} parent=1 // pred_fallthru
      _
    // Predicated region
    $region46: #{tpu_custom_call.1} parent=1 // pred_check
      _
    $region47: #{tpu_custom_call.1} parent=1 // pred_check_branch
      %86 = sbr.rel (0) target = $region49
    $region48: #{tpu_custom_call.1} parent=1 // pred_region
      %88 = dma.done [#allocation9], 8192
    $region49: #{tpu_custom_call.1} parent=1 // pred_fallthru
      _
    %v89 = vld [vmem:[%s0] sm:$0xff]
    %v90 = vld [vmem:[%s0 + $0x8] sm:$0xff]
    %v91 = vld [vmem:[%s0 + $0x10] sm:$0xff]
    %v92 = vld [vmem:[%s0 + $0x18] sm:$0xff]
    %v93 = vld [vmem:[%s0 + $0x20] sm:$0xff]
    %v94 = vld [vmem:[%s0 + $0x28] sm:$0xff]
    %v95 = vld [vmem:[%s0 + $0x30] sm:$0xff]
    %v96 = vld [vmem:[%s0 + $0x38] sm:$0xff]
    %v97 = vld [vmem:[%s0 + $0x40] sm:$0xff]
    %v98 = vld [vmem:[%s0 + $0x48] sm:$0xff]
    %v99 = vld [vmem:[%s0 + $0x50] sm:$0xff]
    %v100 = vld [vmem:[%s0 + $0x58] sm:$0xff]
    %v101 = vld [vmem:[%s0 + $0x60] sm:$0xff]
    %102 = vadd.xlane.f32.xlu0 %v89
    %v103 = vpop.xlane.xlu0 %102
    %104 = vadd.xlane.f32.xlu0 %v90
    %v105 = vpop.xlane.xlu0 %104
    %106 = vadd.xlane.f32.xlu0 %v91
    %v107 = vpop.xlane.xlu0 %106
    %108 = vadd.xlane.f32.xlu0 %v92
    %v109 = vpop.xlane.xlu0 %108
    %110 = vadd.xlane.f32.xlu0 %v93
    %v111 = vpop.xlane.xlu0 %110
    %112 = vadd.xlane.f32.xlu0 %v94
    %v113 = vpop.xlane.xlu0 %112
    %114 = vadd.xlane.f32.xlu0 %v95
    %v115 = vpop.xlane.xlu0 %114
    %116 = vadd.xlane.f32.xlu0 %v96
    %v117 = vpop.xlane.xlu0 %116
    %118 = vadd.xlane.f32.xlu0 %v97
    %v119 = vpop.xlane.xlu0 %118
    %120 = vadd.xlane.f32.xlu0 %v98
    %v121 = vpop.xlane.xlu0 %120
    %122 = vadd.xlane.f32.xlu0 %v99
    %v123 = vpop.xlane.xlu0 %122
    %124 = vadd.xlane.f32.xlu0 %v100
    %v125 = vpop.xlane.xlu0 %124
    %126 = vadd.xlane.f32.xlu0 %v101
    %v127 = vpop.xlane.xlu0 %126
    %v128 = vrcp.pop 128.0
    %v129 = vmul.f32 128.0, %v128
    %v130 = vsub.f32 1.0, %v129
    %v131 = vmul.f32 %v128, %v130
    %v132 = vadd.f32 %v128, %v131
    %vm133 = vweird.f32 %v128
    %v134 = vsel %vm133, %v128, %v132
    %v135 = vmul.f32 %v103, %v134
    %v136 = vmul.f32 %v105, %v134
    %v137 = vmul.f32 %v107, %v134
    %v138 = vmul.f32 %v109, %v134
    %v139 = vmul.f32 %v111, %v134
    %v140 = vmul.f32 %v113, %v134
    %v141 = vmul.f32 %v115, %v134
    %v142 = vmul.f32 %v117, %v134
    %v143 = vmul.f32 %v119, %v134
    %v144 = vmul.f32 %v121, %v134
    %v145 = vmul.f32 %v123, %v134
    %v146 = vmul.f32 %v125, %v134
    %v147 = vmul.f32 %v127, %v134
    %v148 = vmul.f32 %v89, %v89
    %v149 = vmul.f32 %v90, %v90
    %v150 = vmul.f32 %v91, %v91
    %v151 = vmul.f32 %v92, %v92
    %v152 = vmul.f32 %v93, %v93
    %v153 = vmul.f32 %v94, %v94
    %v154 = vmul.f32 %v95, %v95
    %v155 = vmul.f32 %v96, %v96
    %v156 = vmul.f32 %v97, %v97
    %v157 = vmul.f32 %v98, %v98
    %v158 = vmul.f32 %v99, %v99
    %v159 = vmul.f32 %v100, %v100
    %v160 = vmul.f32 %v101, %v101
    %161 = vadd.xlane.f32.xlu0 %v148
    %v162 = vpop.xlane.xlu0 %161
    %163 = vadd.xlane.f32.xlu0 %v149
    %v164 = vpop.xlane.xlu0 %163
    %165 = vadd.xlane.f32.xlu0 %v150
    %v166 = vpop.xlane.xlu0 %165
    %167 = vadd.xlane.f32.xlu0 %v151
    %v168 = vpop.xlane.xlu0 %167
    %169 = vadd.xlane.f32.xlu0 %v152
    %v170 = vpop.xlane.xlu0 %169
    %171 = vadd.xlane.f32.xlu0 %v153
    %v172 = vpop.xlane.xlu0 %171
    %173 = vadd.xlane.f32.xlu0 %v154
    %v174 = vpop.xlane.xlu0 %173
    %175 = vadd.xlane.f32.xlu0 %v155
    %v176 = vpop.xlane.xlu0 %175
    %177 = vadd.xlane.f32.xlu0 %v156
    %v178 = vpop.xlane.xlu0 %177
    %179 = vadd.xlane.f32.xlu0 %v157
    %v180 = vpop.xlane.xlu0 %179
    %181 = vadd.xlane.f32.xlu0 %v158
    %v182 = vpop.xlane.xlu0 %181
    %183 = vadd.xlane.f32.xlu0 %v159
    %v184 = vpop.xlane.xlu0 %183
    %185 = vadd.xlane.f32.xlu0 %v160
    %v186 = vpop.xlane.xlu0 %185
    %v187 = vmul.f32 %v162, %v134
    %v188 = vmul.f32 %v164, %v134
    %v189 = vmul.f32 %v166, %v134
    %v190 = vmul.f32 %v168, %v134
    %v191 = vmul.f32 %v170, %v134
    %v192 = vmul.f32 %v172, %v134
    %v193 = vmul.f32 %v174, %v134
    %v194 = vmul.f32 %v176, %v134
    %v195 = vmul.f32 %v178, %v134
    %v196 = vmul.f32 %v180, %v134
    %v197 = vmul.f32 %v182, %v134
    %v198 = vmul.f32 %v184, %v134
    %v199 = vmul.f32 %v186, %v134
    %v200 = vmul.f32 %v135, %v135
    %v201 = vmul.f32 %v136, %v136
    %v202 = vmul.f32 %v137, %v137
    %v203 = vmul.f32 %v138, %v138
    %v204 = vmul.f32 %v139, %v139
    %v205 = vmul.f32 %v140, %v140
    %v206 = vmul.f32 %v141, %v141
    %v207 = vmul.f32 %v142, %v142
    %v208 = vmul.f32 %v143, %v143
    %v209 = vmul.f32 %v144, %v144
    %v210 = vmul.f32 %v145, %v145
    %v211 = vmul.f32 %v146, %v146
    %v212 = vmul.f32 %v147, %v147
    %v213 = vsub.f32 %v187, %v200
    %v214 = vsub.f32 %v188, %v201
    %v215 = vsub.f32 %v189, %v202
    %v216 = vsub.f32 %v190, %v203
    %v217 = vsub.f32 %v191, %v204
    %v218 = vsub.f32 %v192, %v205
    %v219 = vsub.f32 %v193, %v206
    %v220 = vsub.f32 %v194, %v207
    %v221 = vsub.f32 %v195, %v208
    %v222 = vsub.f32 %v196, %v209
    %v223 = vsub.f32 %v197, %v210
    %v224 = vsub.f32 %v198, %v211
    %v225 = vsub.f32 %v199, %v212
    %v226 = vmax.f32 %v213, 0.0
    %v227 = vmax.f32 %v214, 0.0
    %v228 = vmax.f32 %v215, 0.0
    %v229 = vmax.f32 %v216, 0.0
    %v230 = vmax.f32 %v217, 0.0
    %v231 = vmax.f32 %v218, 0.0
    %v232 = vmax.f32 %v219, 0.0
    %v233 = vmax.f32 %v220, 0.0
    %v234 = vmax.f32 %v221, 0.0
    %v235 = vmax.f32 %v222, 0.0
    %v236 = vmax.f32 %v223, 0.0
    %v237 = vmax.f32 %v224, 0.0
    %v238 = vmax.f32 %v225, 0.0
    %v239 = vadd.f32 %v226, 1e-05
    %v240 = vadd.f32 %v227, 1e-05
    %v241 = vadd.f32 %v228, 1e-05
    %v242 = vadd.f32 %v229, 1e-05
    %v243 = vadd.f32 %v230, 1e-05
    %v244 = vadd.f32 %v231, 1e-05
    %v245 = vadd.f32 %v232, 1e-05
    %v246 = vadd.f32 %v233, 1e-05
    %v247 = vadd.f32 %v234, 1e-05
    %v248 = vadd.f32 %v235, 1e-05
    %v249 = vadd.f32 %v236, 1e-05
    %v250 = vadd.f32 %v237, 1e-05
    %v251 = vadd.f32 %v238, 1e-05
    %v252 = vrsqrt.pop %v239
    %v253 = vmul.f32 %v252, %v239
    %v254 = vmul.f32 %v253, %v252
    %v255 = vmul.f32 0.5, %v254
    %v256 = vsub.f32 1.5, %v255
    %v257 = vmul.f32 %v252, %v256
    %vm258 = vweird.f32 %v239
    %vm259 = vweird.f32 %v252
    %vm260 = vmor %vm258, %vm259
    %v261 = vsel %vm260, %v252, %v257
    %v262 = vrsqrt.pop %v240
    %v263 = vmul.f32 %v262, %v240
    %v264 = vmul.f32 %v263, %v262
    %v265 = vmul.f32 0.5, %v264
    %v266 = vsub.f32 1.5, %v265
    %v267 = vmul.f32 %v262, %v266
    %vm268 = vweird.f32 %v240
    %vm269 = vweird.f32 %v262
    %vm270 = vmor %vm268, %vm269
    %v271 = vsel %vm270, %v262, %v267
    %v272 = vrsqrt.pop %v241
    %v273 = vmul.f32 %v272, %v241
    %v274 = vmul.f32 %v273, %v272
    %v275 = vmul.f32 0.5, %v274
    %v276 = vsub.f32 1.5, %v275
    %v277 = vmul.f32 %v272, %v276
    %vm278 = vweird.f32 %v241
    %vm279 = vweird.f32 %v272
    %vm280 = vmor %vm278, %vm279
    %v281 = vsel %vm280, %v272, %v277
    %v282 = vrsqrt.pop %v242
    %v283 = vmul.f32 %v282, %v242
    %v284 = vmul.f32 %v283, %v282
    %v285 = vmul.f32 0.5, %v284
    %v286 = vsub.f32 1.5, %v285
    %v287 = vmul.f32 %v282, %v286
    %vm288 = vweird.f32 %v242
    %vm289 = vweird.f32 %v282
    %vm290 = vmor %vm288, %vm289
    %v291 = vsel %vm290, %v282, %v287
    %v292 = vrsqrt.pop %v243
    %v293 = vmul.f32 %v292, %v243
    %v294 = vmul.f32 %v293, %v292
    %v295 = vmul.f32 0.5, %v294
    %v296 = vsub.f32 1.5, %v295
    %v297 = vmul.f32 %v292, %v296
    %vm298 = vweird.f32 %v243
    %vm299 = vweird.f32 %v292
    %vm300 = vmor %vm298, %vm299
    %v301 = vsel %vm300, %v292, %v297
    %v302 = vrsqrt.pop %v244
    %v303 = vmul.f32 %v302, %v244
    %v304 = vmul.f32 %v303, %v302
    %v305 = vmul.f32 0.5, %v304
    %v306 = vsub.f32 1.5, %v305
    %v307 = vmul.f32 %v302, %v306
    %vm308 = vweird.f32 %v244
    %vm309 = vweird.f32 %v302
    %vm310 = vmor %vm308, %vm309
    %v311 = vsel %vm310, %v302, %v307
    %v312 = vrsqrt.pop %v245
    %v313 = vmul.f32 %v312, %v245
    %v314 = vmul.f32 %v313, %v312
    %v315 = vmul.f32 0.5, %v314
    %v316 = vsub.f32 1.5, %v315
    %v317 = vmul.f32 %v312, %v316
    %vm318 = vweird.f32 %v245
    %vm319 = vweird.f32 %v312
    %vm320 = vmor %vm318, %vm319
    %v321 = vsel %vm320, %v312, %v317
    %v322 = vrsqrt.pop %v246
    %v323 = vmul.f32 %v322, %v246
    %v324 = vmul.f32 %v323, %v322
    %v325 = vmul.f32 0.5, %v324
    %v326 = vsub.f32 1.5, %v325
    %v327 = vmul.f32 %v322, %v326
    %vm328 = vweird.f32 %v246
    %vm329 = vweird.f32 %v322
    %vm330 = vmor %vm328, %vm329
    %v331 = vsel %vm330, %v322, %v327
    %v332 = vrsqrt.pop %v247
    %v333 = vmul.f32 %v332, %v247
    %v334 = vmul.f32 %v333, %v332
    %v335 = vmul.f32 0.5, %v334
    %v336 = vsub.f32 1.5, %v335
    %v337 = vmul.f32 %v332, %v336
    %vm338 = vweird.f32 %v247
    %vm339 = vweird.f32 %v332
    %vm340 = vmor %vm338, %vm339
    %v341 = vsel %vm340, %v332, %v337
    %v342 = vrsqrt.pop %v248
    %v343 = vmul.f32 %v342, %v248
    %v344 = vmul.f32 %v343, %v342
    %v345 = vmul.f32 0.5, %v344
    %v346 = vsub.f32 1.5, %v345
    %v347 = vmul.f32 %v342, %v346
    %vm348 = vweird.f32 %v248
    %vm349 = vweird.f32 %v342
    %vm350 = vmor %vm348, %vm349
    %v351 = vsel %vm350, %v342, %v347
    %v352 = vrsqrt.pop %v249
    %v353 = vmul.f32 %v352, %v249
    %v354 = vmul.f32 %v353, %v352
    %v355 = vmul.f32 0.5, %v354
    %v356 = vsub.f32 1.5, %v355
    %v357 = vmul.f32 %v352, %v356
    %vm358 = vweird.f32 %v249
    %vm359 = vweird.f32 %v352
    %vm360 = vmor %vm358, %vm359
    %v361 = vsel %vm360, %v352, %v357
    %v362 = vrsqrt.pop %v250
    %v363 = vmul.f32 %v362, %v250
    %v364 = vmul.f32 %v363, %v362
    %v365 = vmul.f32 0.5, %v364
    %v366 = vsub.f32 1.5, %v365
    %v367 = vmul.f32 %v362, %v366
    %vm368 = vweird.f32 %v250
    %vm369 = vweird.f32 %v362
    %vm370 = vmor %vm368, %vm369
    %v371 = vsel %vm370, %v362, %v367
    %v372 = vrsqrt.pop %v251
    %v373 = vmul.f32 %v372, %v251
    %v374 = vmul.f32 %v373, %v372
    %v375 = vmul.f32 0.5, %v374
    %v376 = vsub.f32 1.5, %v375
    %v377 = vmul.f32 %v372, %v376
    %vm378 = vweird.f32 %v251
    %vm379 = vweird.f32 %v372
    %vm380 = vmor %vm378, %vm379
    %v381 = vsel %vm380, %v372, %v377
    %v382 = vsub.f32 %v89, %v135
    %v383 = vsub.f32 %v90, %v136
    %v384 = vsub.f32 %v91, %v137
    %v385 = vsub.f32 %v92, %v138
    %v386 = vsub.f32 %v93, %v139
    %v387 = vsub.f32 %v94, %v140
    %v388 = vsub.f32 %v95, %v141
    %v389 = vsub.f32 %v96, %v142
    %v390 = vsub.f32 %v97, %v143
    %v391 = vsub.f32 %v98, %v144
    %v392 = vsub.f32 %v99, %v145
    %v393 = vsub.f32 %v100, %v146
    %v394 = vsub.f32 %v101, %v147
    %v395 = vmul.f32 %v382, %v261
    %v396 = vmul.f32 %v383, %v271
    %v397 = vmul.f32 %v384, %v281
    %v398 = vmul.f32 %v385, %v291
    %v399 = vmul.f32 %v386, %v301
    %v400 = vmul.f32 %v387, %v311
    %v401 = vmul.f32 %v388, %v321
    %v402 = vmul.f32 %v389, %v331
    %v403 = vmul.f32 %v390, %v341
    %v404 = vmul.f32 %v391, %v351
    %v405 = vmul.f32 %v392, %v361
    %v406 = vmul.f32 %v393, %v371
    %v407 = vmul.f32 %v394, %v381
    %v408 = vld [vmem:[#allocation2] sm:$0x1]
    %v410 = vperm.slane %v408, 0
    %v412 = vmul.f32 %v395, %v410
    %v413 = vmul.f32 %v396, %v410
    %v414 = vmul.f32 %v397, %v410
    %v415 = vmul.f32 %v398, %v410
    %v416 = vmul.f32 %v399, %v410
    %v417 = vmul.f32 %v400, %v410
    %v418 = vmul.f32 %v401, %v410
    %v419 = vmul.f32 %v402, %v410
    %v420 = vmul.f32 %v403, %v410
    %v421 = vmul.f32 %v404, %v410
    %v422 = vmul.f32 %v405, %v410
    %v423 = vmul.f32 %v406, %v410
    %v424 = vmul.f32 %v407, %v410
    %v425 = vld [vmem:[#allocation5] sm:$0x1]
    %v427 = vperm.slane %v425, 0
    %v429 = vadd.f32 %v412, %v427
    %v430 = vadd.f32 %v413, %v427
    %v431 = vadd.f32 %v414, %v427
    %v432 = vadd.f32 %v415, %v427
    %v433 = vadd.f32 %v416, %v427
    %v434 = vadd.f32 %v417, %v427
    %v435 = vadd.f32 %v418, %v427
    %v436 = vadd.f32 %v419, %v427
    %v437 = vadd.f32 %v420, %v427
    %v438 = vadd.f32 %v421, %v427
    %v439 = vadd.f32 %v422, %v427
    %v440 = vadd.f32 %v423, %v427
    %v441 = vadd.f32 %v424, %v427
    %v442 = vld [vmem:[#allocation7] sm:$0xff]
    %v443 = vld [vmem:[#allocation7 + $0x8] sm:$0xff]
    %v444 = vld [vmem:[#allocation7 + $0x10] sm:$0xff]
    %v445 = vld [vmem:[#allocation7 + $0x18] sm:$0xff]
    %v446 = vld [vmem:[#allocation7 + $0x20] sm:$0xff]
    %v447 = vld [vmem:[#allocation7 + $0x28] sm:$0xff]
    %v448 = vld [vmem:[#allocation7 + $0x30] sm:$0xff]
    %v449 = vld [vmem:[#allocation7 + $0x38] sm:$0xff]
    %v450 = vld [vmem:[#allocation7 + $0x40] sm:$0xff]
    %v451 = vld [vmem:[#allocation7 + $0x48] sm:$0xff]
    %v452 = vld [vmem:[#allocation7 + $0x50] sm:$0xff]
    %v453 = vld [vmem:[#allocation7 + $0x58] sm:$0xff]
    %v454 = vld [vmem:[#allocation7 + $0x60] sm:$0xff]
    %v455 = vld [vmem:[#allocation7 + $0x68] sm:$0xff]
    %v456 = vld [vmem:[#allocation7 + $0x70] sm:$0xff]
    %v457 = vld [vmem:[#allocation7 + $0x78] sm:$0xff]
    %v458 = vld [vmem:[#allocation7 + $0x80] sm:$0xff]
    %v459 = vld [vmem:[#allocation7 + $0x88] sm:$0xff]
    %v460 = vld [vmem:[#allocation7 + $0x90] sm:$0xff]
    %v461 = vld [vmem:[#allocation7 + $0x98] sm:$0xff]
    %v462 = vld [vmem:[#allocation7 + $0xa0] sm:$0xff]
    %v463 = vld [vmem:[#allocation7 + $0xa8] sm:$0xff]
    %v464 = vld [vmem:[#allocation7 + $0xb0] sm:$0xff]
    %v465 = vld [vmem:[#allocation7 + $0xb8] sm:$0xff]
    %v466 = vld [vmem:[#allocation7 + $0xc0] sm:$0xff]
    %v467 = vld [vmem:[#allocation7 + $0xc8] sm:$0xff]
    %v468 = vld [vmem:[#allocation7 + $0xd0] sm:$0xff]
    %v469 = vld [vmem:[#allocation7 + $0xd8] sm:$0xff]
    %v470 = vld [vmem:[#allocation7 + $0xe0] sm:$0xff]
    %v471 = vld [vmem:[#allocation7 + $0xe8] sm:$0xff]
    %v472 = vld [vmem:[#allocation7 + $0xf0] sm:$0xff]
    %v473 = vld [vmem:[#allocation7 + $0xf8] sm:$0xff]
    %v474 = vld [vmem:[#allocation7 + $0x100] sm:$0xff]
    %v475 = vld [vmem:[#allocation7 + $0x108] sm:$0xff]
    %v476 = vld [vmem:[#allocation7 + $0x110] sm:$0xff]
    %v477 = vld [vmem:[#allocation7 + $0x118] sm:$0xff]
    %v478 = vld [vmem:[#allocation7 + $0x120] sm:$0xff]
    %v479 = vld [vmem:[#allocation7 + $0x128] sm:$0xff]
    %v480 = vld [vmem:[#allocation7 + $0x130] sm:$0xff]
    %v481 = vld [vmem:[#allocation7 + $0x138] sm:$0xff]
    %v482 = vld [vmem:[#allocation7 + $0x140] sm:$0xff]
    %v483 = vld [vmem:[#allocation7 + $0x148] sm:$0xff]
    %v484 = vld [vmem:[#allocation7 + $0x150] sm:$0xff]
    %v485 = vld [vmem:[#allocation7 + $0x158] sm:$0xff]
    %v486 = vld [vmem:[#allocation7 + $0x160] sm:$0xff]
    %v487 = vld [vmem:[#allocation7 + $0x168] sm:$0xff]
    %v488 = vld [vmem:[#allocation7 + $0x170] sm:$0xff]
    %v489 = vld [vmem:[#allocation7 + $0x178] sm:$0xff]
    %v490 = vld [vmem:[#allocation7 + $0x180] sm:$0xff]
    %v491 = vld [vmem:[#allocation7 + $0x188] sm:$0xff]
    %v492 = vld [vmem:[#allocation7 + $0x190] sm:$0xff]
    %v493 = vld [vmem:[#allocation7 + $0x198] sm:$0xff]
    %v494 = vld [vmem:[#allocation7 + $0x1a0] sm:$0xff]
    %v495 = vld [vmem:[#allocation7 + $0x1a8] sm:$0xff]
    %v496 = vld [vmem:[#allocation7 + $0x1b0] sm:$0xff]
    %v497 = vld [vmem:[#allocation7 + $0x1b8] sm:$0xff]
    %v498 = vld [vmem:[#allocation7 + $0x1c0] sm:$0xff]
    %v499 = vld [vmem:[#allocation7 + $0x1c8] sm:$0xff]
    %v500 = vld [vmem:[#allocation7 + $0x1d0] sm:$0xff]
    %v501 = vld [vmem:[#allocation7 + $0x1d8] sm:$0xff]
    %v502 = vld [vmem:[#allocation7 + $0x1e0] sm:$0xff]
    %v503 = vld [vmem:[#allocation7 + $0x1e8] sm:$0xff]
    %v504 = vld [vmem:[#allocation7 + $0x1f0] sm:$0xff]
    %v505 = vld [vmem:[#allocation7 + $0x1f8] sm:$0xff]
    %v506 = vld [vmem:[%s5] sm:$0xf]
    %v508 = vperm.slane %v506, 0
    %v509 = vperm.slane %v506, 1
    %v510 = vperm.slane %v506, 2
    %v511 = vperm.slane %v506, 3
    %516 = vmatpush.msra.mxu0 %v502
    %517 = vmatpush.msra.mxu0 %v498
    %518 = vmatpush.msra.mxu0 %v494
    %519 = vmatpush.msra.mxu0 %v490
    %520 = vmatpush.msra.mxu0 %v486
    %521 = vmatpush.msra.mxu0 %v482
    %522 = vmatpush.msra.mxu0 %v478
    %523 = vmatpush.msra.mxu0 %v474
    %524 = vmatpush.msra.mxu0 %v470
    %525 = vmatpush.msra.mxu0 %v466
    %526 = vmatpush.msra.mxu0 %v462
    %527 = vmatpush.msra.mxu0 %v458
    %528 = vmatpush.msra.mxu0 %v454
    %529 = vmatpush.msra.mxu0 %v450
    %530 = vmatpush.msra.mxu0 %v446
    %531 = vmatpush.msra.mxu0 %v442
    %532 = vmatmul.f32.gmra.mxu0 %v429
    %v533 = vpop.f32.mrf.mxu0
    %v534 = vadd.f32 %v508, %v533
    %535 = vmatmul.f32.gmra.mxu0 %v430
    %v536 = vpop.f32.mrf.mxu0
    %v537 = vadd.f32 %v508, %v536
    %538 = vmatmul.f32.gmra.mxu0 %v431
    %v539 = vpop.f32.mrf.mxu0
    %v540 = vadd.f32 %v508, %v539
    %541 = vmatmul.f32.gmra.mxu0 %v432
    %v542 = vpop.f32.mrf.mxu0
    %v543 = vadd.f32 %v508, %v542
    %544 = vmatmul.f32.gmra.mxu0 %v433
    %v545 = vpop.f32.mrf.mxu0
    %v546 = vadd.f32 %v508, %v545
    %547 = vmatmul.f32.gmra.mxu0 %v434
    %v548 = vpop.f32.mrf.mxu0
    %v549 = vadd.f32 %v508, %v548
    %550 = vmatmul.f32.gmra.mxu0 %v435
    %v551 = vpop.f32.mrf.mxu0
    %v552 = vadd.f32 %v508, %v551
    %553 = vmatmul.f32.gmra.mxu0 %v436
    %v554 = vpop.f32.mrf.mxu0
    %v555 = vadd.f32 %v508, %v554
    %556 = vmatmul.f32.gmra.mxu0 %v437
    %v557 = vpop.f32.mrf.mxu0
    %v558 = vadd.f32 %v508, %v557
    %559 = vmatmul.f32.gmra.mxu0 %v438
    %v560 = vpop.f32.mrf.mxu0
    %v561 = vadd.f32 %v508, %v560
    %562 = vmatmul.f32.gmra.mxu0 %v439
    %v563 = vpop.f32.mrf.mxu0
    %v564 = vadd.f32 %v508, %v563
    %565 = vmatmul.f32.gmra.mxu0 %v440
    %v566 = vpop.f32.mrf.mxu0
    %v567 = vadd.f32 %v508, %v566
    %568 = vmatmul.f32.gmra.mxu0 %v441
    %v569 = vpop.f32.mrf.mxu0
    %v570 = vadd.f32 %v508, %v569
    %571 = vdwg.mxu0
    %572 = vmatpush.msra.mxu0 %v503
    %573 = vmatpush.msra.mxu0 %v499
    %574 = vmatpush.msra.mxu0 %v495
    %575 = vmatpush.msra.mxu0 %v491
    %576 = vmatpush.msra.mxu0 %v487
    %577 = vmatpush.msra.mxu0 %v483
    %578 = vmatpush.msra.mxu0 %v479
    %579 = vmatpush.msra.mxu0 %v475
    %580 = vmatpush.msra.mxu0 %v471
    %581 = vmatpush.msra.mxu0 %v467
    %582 = vmatpush.msra.mxu0 %v463
    %583 = vmatpush.msra.mxu0 %v459
    %584 = vmatpush.msra.mxu0 %v455
    %585 = vmatpush.msra.mxu0 %v451
    %586 = vmatpush.msra.mxu0 %v447
    %587 = vmatpush.msra.mxu0 %v443
    %588 = vmatmul.f32.gmra.mxu0 %v429
    %v589 = vpop.f32.mrf.mxu0
    %v590 = vadd.f32 %v509, %v589
    %591 = vmatmul.f32.gmra.mxu0 %v430
    %v592 = vpop.f32.mrf.mxu0
    %v593 = vadd.f32 %v509, %v592
    %594 = vmatmul.f32.gmra.mxu0 %v431
    %v595 = vpop.f32.mrf.mxu0
    %v596 = vadd.f32 %v509, %v595
    %597 = vmatmul.f32.gmra.mxu0 %v432
    %v598 = vpop.f32.mrf.mxu0
    %v599 = vadd.f32 %v509, %v598
    %600 = vmatmul.f32.gmra.mxu0 %v433
    %v601 = vpop.f32.mrf.mxu0
    %v602 = vadd.f32 %v509, %v601
    %603 = vmatmul.f32.gmra.mxu0 %v434
    %v604 = vpop.f32.mrf.mxu0
    %v605 = vadd.f32 %v509, %v604
    %606 = vmatmul.f32.gmra.mxu0 %v435
    %v607 = vpop.f32.mrf.mxu0
    %v608 = vadd.f32 %v509, %v607
    %609 = vmatmul.f32.gmra.mxu0 %v436
    %v610 = vpop.f32.mrf.mxu0
    %v611 = vadd.f32 %v509, %v610
    %612 = vmatmul.f32.gmra.mxu0 %v437
    %v613 = vpop.f32.mrf.mxu0
    %v614 = vadd.f32 %v509, %v613
    %615 = vmatmul.f32.gmra.mxu0 %v438
    %v616 = vpop.f32.mrf.mxu0
    %v617 = vadd.f32 %v509, %v616
    %618 = vmatmul.f32.gmra.mxu0 %v439
    %v619 = vpop.f32.mrf.mxu0
    %v620 = vadd.f32 %v509, %v619
    %621 = vmatmul.f32.gmra.mxu0 %v440
    %v622 = vpop.f32.mrf.mxu0
    %v623 = vadd.f32 %v509, %v622
    %624 = vmatmul.f32.gmra.mxu0 %v441
    %v625 = vpop.f32.mrf.mxu0
    %v626 = vadd.f32 %v509, %v625
    %627 = vdwg.mxu0
    %628 = vmatpush.msra.mxu0 %v504
    %629 = vmatpush.msra.mxu0 %v500
    %630 = vmatpush.msra.mxu0 %v496
    %631 = vmatpush.msra.mxu0 %v492
    %632 = vmatpush.msra.mxu0 %v488
    %633 = vmatpush.msra.mxu0 %v484
    %634 = vmatpush.msra.mxu0 %v480
    %635 = vmatpush.msra.mxu0 %v476
    %636 = vmatpush.msra.mxu0 %v472
    %637 = vmatpush.msra.mxu0 %v468
    %638 = vmatpush.msra.mxu0 %v464
    %639 = vmatpush.msra.mxu0 %v460
    %640 = vmatpush.msra.mxu0 %v456
    %641 = vmatpush.msra.mxu0 %v452
    %642 = vmatpush.msra.mxu0 %v448
    %643 = vmatpush.msra.mxu0 %v444
    %644 = vmatmul.f32.gmra.mxu0 %v429
    %v645 = vpop.f32.mrf.mxu0
    %v646 = vadd.f32 %v510, %v645
    %647 = vmatmul.f32.gmra.mxu0 %v430
    %v648 = vpop.f32.mrf.mxu0
    %v649 = vadd.f32 %v510, %v648
    %650 = vmatmul.f32.gmra.mxu0 %v431
    %v651 = vpop.f32.mrf.mxu0
    %v652 = vadd.f32 %v510, %v651
    %653 = vmatmul.f32.gmra.mxu0 %v432
    %v654 = vpop.f32.mrf.mxu0
    %v655 = vadd.f32 %v510, %v654
    %656 = vmatmul.f32.gmra.mxu0 %v433
    %v657 = vpop.f32.mrf.mxu0
    %v658 = vadd.f32 %v510, %v657
    %659 = vmatmul.f32.gmra.mxu0 %v434
    %v660 = vpop.f32.mrf.mxu0
    %v661 = vadd.f32 %v510, %v660
    %662 = vmatmul.f32.gmra.mxu0 %v435
    %v663 = vpop.f32.mrf.mxu0
    %v664 = vadd.f32 %v510, %v663
    %665 = vmatmul.f32.gmra.mxu0 %v436
    %v666 = vpop.f32.mrf.mxu0
    %v667 = vadd.f32 %v510, %v666
    %668 = vmatmul.f32.gmra.mxu0 %v437
    %v669 = vpop.f32.mrf.mxu0
    %v670 = vadd.f32 %v510, %v669
    %671 = vmatmul.f32.gmra.mxu0 %v438
    %v672 = vpop.f32.mrf.mxu0
    %v673 = vadd.f32 %v510, %v672
    %674 = vmatmul.f32.gmra.mxu0 %v439
    %v675 = vpop.f32.mrf.mxu0
    %v676 = vadd.f32 %v510, %v675
    %677 = vmatmul.f32.gmra.mxu0 %v440
    %v678 = vpop.f32.mrf.mxu0
    %v679 = vadd.f32 %v510, %v678
    %680 = vmatmul.f32.gmra.mxu0 %v441
    %v681 = vpop.f32.mrf.mxu0
    %v682 = vadd.f32 %v510, %v681
    %683 = vdwg.mxu0
    %684 = vmatpush.msra.mxu0 %v505
    %685 = vmatpush.msra.mxu0 %v501
    %686 = vmatpush.msra.mxu0 %v497
    %687 = vmatpush.msra.mxu0 %v493
    %688 = vmatpush.msra.mxu0 %v489
    %689 = vmatpush.msra.mxu0 %v485
    %690 = vmatpush.msra.mxu0 %v481
    %691 = vmatpush.msra.mxu0 %v477
    %692 = vmatpush.msra.mxu0 %v473
    %693 = vmatpush.msra.mxu0 %v469
    %694 = vmatpush.msra.mxu0 %v465
    %695 = vmatpush.msra.mxu0 %v461
    %696 = vmatpush.msra.mxu0 %v457
    %697 = vmatpush.msra.mxu0 %v453
    %698 = vmatpush.msra.mxu0 %v449
    %699 = vmatpush.msra.mxu0 %v445
    %700 = vmatmul.f32.gmra.mxu0 %v429
    %v701 = vpop.f32.mrf.mxu0
    %v702 = vadd.f32 %v511, %v701
    %703 = vmatmul.f32.gmra.mxu0 %v430
    %v704 = vpop.f32.mrf.mxu0
    %v705 = vadd.f32 %v511, %v704
    %706 = vmatmul.f32.gmra.mxu0 %v431
    %v707 = vpop.f32.mrf.mxu0
    %v708 = vadd.f32 %v511, %v707
    %709 = vmatmul.f32.gmra.mxu0 %v432
    %v710 = vpop.f32.mrf.mxu0
    %v711 = vadd.f32 %v511, %v710
    %712 = vmatmul.f32.gmra.mxu0 %v433
    %v713 = vpop.f32.mrf.mxu0
    %v714 = vadd.f32 %v511, %v713
    %715 = vmatmul.f32.gmra.mxu0 %v434
    %v716 = vpop.f32.mrf.mxu0
    %v717 = vadd.f32 %v511, %v716
    %718 = vmatmul.f32.gmra.mxu0 %v435
    %v719 = vpop.f32.mrf.mxu0
    %v720 = vadd.f32 %v511, %v719
    %721 = vmatmul.f32.gmra.mxu0 %v436
    %v722 = vpop.f32.mrf.mxu0
    %v723 = vadd.f32 %v511, %v722
    %724 = vmatmul.f32.gmra.mxu0 %v437
    %v725 = vpop.f32.mrf.mxu0
    %v726 = vadd.f32 %v511, %v725
    %727 = vmatmul.f32.gmra.mxu0 %v438
    %v728 = vpop.f32.mrf.mxu0
    %v729 = vadd.f32 %v511, %v728
    %730 = vmatmul.f32.gmra.mxu0 %v439
    %v731 = vpop.f32.mrf.mxu0
    %v732 = vadd.f32 %v511, %v731
    %733 = vmatmul.f32.gmra.mxu0 %v440
    %v734 = vpop.f32.mrf.mxu0
    %v735 = vadd.f32 %v511, %v734
    %736 = vmatmul.f32.gmra.mxu0 %v441
    %v737 = vpop.f32.mrf.mxu0
    %v738 = vadd.f32 %v511, %v737
    %739 = vdwg.mxu0
    %v740 = vmax.f32 %v534, 0.0
    %v741 = vmax.f32 %v590, 0.0
    %v742 = vmax.f32 %v646, 0.0
    %v743 = vmax.f32 %v702, 0.0
    %v744 = vmax.f32 %v537, 0.0
    %v745 = vmax.f32 %v593, 0.0
    %v746 = vmax.f32 %v649, 0.0
    %v747 = vmax.f32 %v705, 0.0
    %v748 = vmax.f32 %v540, 0.0
    %v749 = vmax.f32 %v596, 0.0
    %v750 = vmax.f32 %v652, 0.0
    %v751 = vmax.f32 %v708, 0.0
    %v752 = vmax.f32 %v543, 0.0
    %v753 = vmax.f32 %v599, 0.0
    %v754 = vmax.f32 %v655, 0.0
    %v755 = vmax.f32 %v711, 0.0
    %v756 = vmax.f32 %v546, 0.0
    %v757 = vmax.f32 %v602, 0.0
    %v758 = vmax.f32 %v658, 0.0
    %v759 = vmax.f32 %v714, 0.0
    %v760 = vmax.f32 %v549, 0.0
    %v761 = vmax.f32 %v605, 0.0
    %v762 = vmax.f32 %v661, 0.0
    %v763 = vmax.f32 %v717, 0.0
    %v764 = vmax.f32 %v552, 0.0
    %v765 = vmax.f32 %v608, 0.0
    %v766 = vmax.f32 %v664, 0.0
    %v767 = vmax.f32 %v720, 0.0
    %v768 = vmax.f32 %v555, 0.0
    %v769 = vmax.f32 %v611, 0.0
    %v770 = vmax.f32 %v667, 0.0
    %v771 = vmax.f32 %v723, 0.0
    %v772 = vmax.f32 %v558, 0.0
    %v773 = vmax.f32 %v614, 0.0
    %v774 = vmax.f32 %v670, 0.0
    %v775 = vmax.f32 %v726, 0.0
    %v776 = vmax.f32 %v561, 0.0
    %v777 = vmax.f32 %v617, 0.0
    %v778 = vmax.f32 %v673, 0.0
    %v779 = vmax.f32 %v729, 0.0
    %v780 = vmax.f32 %v564, 0.0
    %v781 = vmax.f32 %v620, 0.0
    %v782 = vmax.f32 %v676, 0.0
    %v783 = vmax.f32 %v732, 0.0
    %v784 = vmax.f32 %v567, 0.0
    %v785 = vmax.f32 %v623, 0.0
    %v786 = vmax.f32 %v679, 0.0
    %v787 = vmax.f32 %v735, 0.0
    %v788 = vmax.f32 %v570, 0.0
    %v789 = vmax.f32 %v626, 0.0
    %v790 = vmax.f32 %v682, 0.0
    %v791 = vmax.f32 %v738, 0.0
    %v792 = vld [vmem:[#allocation8] sm:$0xff]
    %v793 = vld [vmem:[#allocation8 + $0x8] sm:$0xff]
    %v794 = vld [vmem:[#allocation8 + $0x10] sm:$0xff]
    %v795 = vld [vmem:[#allocation8 + $0x18] sm:$0xff]
    %v796 = vld [vmem:[#allocation8 + $0x20] sm:$0xff]
    %v797 = vld [vmem:[#allocation8 + $0x28] sm:$0xff]
    %v798 = vld [vmem:[#allocation8 + $0x30] sm:$0xff]
    %v799 = vld [vmem:[#allocation8 + $0x38] sm:$0xff]
    %v800 = vld [vmem:[#allocation8 + $0x40] sm:$0xff]
    %v801 = vld [vmem:[#allocation8 + $0x48] sm:$0xff]
    %v802 = vld [vmem:[#allocation8 + $0x50] sm:$0xff]
    %v803 = vld [vmem:[#allocation8 + $0x58] sm:$0xff]
    %v804 = vld [vmem:[#allocation8 + $0x60] sm:$0xff]
    %v805 = vld [vmem:[#allocation8 + $0x68] sm:$0xff]
    %v806 = vld [vmem:[#allocation8 + $0x70] sm:$0xff]
    %v807 = vld [vmem:[#allocation8 + $0x78] sm:$0xff]
    %v808 = vld [vmem:[#allocation8 + $0x80] sm:$0xff]
    %v809 = vld [vmem:[#allocation8 + $0x88] sm:$0xff]
    %v810 = vld [vmem:[#allocation8 + $0x90] sm:$0xff]
    %v811 = vld [vmem:[#allocation8 + $0x98] sm:$0xff]
    %v812 = vld [vmem:[#allocation8 + $0xa0] sm:$0xff]
    %v813 = vld [vmem:[#allocation8 + $0xa8] sm:$0xff]
    %v814 = vld [vmem:[#allocation8 + $0xb0] sm:$0xff]
    %v815 = vld [vmem:[#allocation8 + $0xb8] sm:$0xff]
    %v816 = vld [vmem:[#allocation8 + $0xc0] sm:$0xff]
    %v817 = vld [vmem:[#allocation8 + $0xc8] sm:$0xff]
    %v818 = vld [vmem:[#allocation8 + $0xd0] sm:$0xff]
    %v819 = vld [vmem:[#allocation8 + $0xd8] sm:$0xff]
    %v820 = vld [vmem:[#allocation8 + $0xe0] sm:$0xff]
    %v821 = vld [vmem:[#allocation8 + $0xe8] sm:$0xff]
    %v822 = vld [vmem:[#allocation8 + $0xf0] sm:$0xff]
    %v823 = vld [vmem:[#allocation8 + $0xf8] sm:$0xff]
    %v824 = vld [vmem:[#allocation8 + $0x100] sm:$0xff]
    %v825 = vld [vmem:[#allocation8 + $0x108] sm:$0xff]
    %v826 = vld [vmem:[#allocation8 + $0x110] sm:$0xff]
    %v827 = vld [vmem:[#allocation8 + $0x118] sm:$0xff]
    %v828 = vld [vmem:[#allocation8 + $0x120] sm:$0xff]
    %v829 = vld [vmem:[#allocation8 + $0x128] sm:$0xff]
    %v830 = vld [vmem:[#allocation8 + $0x130] sm:$0xff]
    %v831 = vld [vmem:[#allocation8 + $0x138] sm:$0xff]
    %v832 = vld [vmem:[#allocation8 + $0x140] sm:$0xff]
    %v833 = vld [vmem:[#allocation8 + $0x148] sm:$0xff]
    %v834 = vld [vmem:[#allocation8 + $0x150] sm:$0xff]
    %v835 = vld [vmem:[#allocation8 + $0x158] sm:$0xff]
    %v836 = vld [vmem:[#allocation8 + $0x160] sm:$0xff]
    %v837 = vld [vmem:[#allocation8 + $0x168] sm:$0xff]
    %v838 = vld [vmem:[#allocation8 + $0x170] sm:$0xff]
    %v839 = vld [vmem:[#allocation8 + $0x178] sm:$0xff]
    %v840 = vld [vmem:[#allocation8 + $0x180] sm:$0xff]
    %v841 = vld [vmem:[#allocation8 + $0x188] sm:$0xff]
    %v842 = vld [vmem:[#allocation8 + $0x190] sm:$0xff]
    %v843 = vld [vmem:[#allocation8 + $0x198] sm:$0xff]
    %v844 = vld [vmem:[#allocation8 + $0x1a0] sm:$0xff]
    %v845 = vld [vmem:[#allocation8 + $0x1a8] sm:$0xff]
    %v846 = vld [vmem:[#allocation8 + $0x1b0] sm:$0xff]
    %v847 = vld [vmem:[#allocation8 + $0x1b8] sm:$0xff]
    %v848 = vld [vmem:[#allocation8 + $0x1c0] sm:$0xff]
    %v849 = vld [vmem:[#allocation8 + $0x1c8] sm:$0xff]
    %v850 = vld [vmem:[#allocation8 + $0x1d0] sm:$0xff]
    %v851 = vld [vmem:[#allocation8 + $0x1d8] sm:$0xff]
    %v852 = vld [vmem:[#allocation8 + $0x1e0] sm:$0xff]
    %v853 = vld [vmem:[#allocation8 + $0x1e8] sm:$0xff]
    %v854 = vld [vmem:[#allocation8 + $0x1f0] sm:$0xff]
    %v855 = vld [vmem:[#allocation8 + $0x1f8] sm:$0xff]
    %v856 = vld [vmem:[%s7] sm:$0x1]
    %v858 = vperm.slane %v856, 0
    %860 = vmatpush.msra.mxu0 %v807
    %861 = vmatpush.msra.mxu0 %v806
    %862 = vmatpush.msra.mxu0 %v805
    %863 = vmatpush.msra.mxu0 %v804
    %864 = vmatpush.msra.mxu0 %v803
    %865 = vmatpush.msra.mxu0 %v802
    %866 = vmatpush.msra.mxu0 %v801
    %867 = vmatpush.msra.mxu0 %v800
    %868 = vmatpush.msra.mxu0 %v799
    %869 = vmatpush.msra.mxu0 %v798
    %870 = vmatpush.msra.mxu0 %v797
    %871 = vmatpush.msra.mxu0 %v796
    %872 = vmatpush.msra.mxu0 %v795
    %873 = vmatpush.msra.mxu0 %v794
    %874 = vmatpush.msra.mxu0 %v793
    %875 = vmatpush.msra.mxu0 %v792
    %876 = vmatmul.f32.gmra.mxu0 %v740
    %v877 = vpop.f32.mrf.mxu0
    %v878 = vadd.f32 %v858, %v877
    %879 = vmatmul.f32.gmra.mxu0 %v744
    %v880 = vpop.f32.mrf.mxu0
    %v881 = vadd.f32 %v858, %v880
    %882 = vmatmul.f32.gmra.mxu0 %v748
    %v883 = vpop.f32.mrf.mxu0
    %v884 = vadd.f32 %v858, %v883
    %885 = vmatmul.f32.gmra.mxu0 %v752
    %v886 = vpop.f32.mrf.mxu0
    %v887 = vadd.f32 %v858, %v886
    %888 = vmatmul.f32.gmra.mxu0 %v756
    %v889 = vpop.f32.mrf.mxu0
    %v890 = vadd.f32 %v858, %v889
    %891 = vmatmul.f32.gmra.mxu0 %v760
    %v892 = vpop.f32.mrf.mxu0
    %v893 = vadd.f32 %v858, %v892
    %894 = vmatmul.f32.gmra.mxu0 %v764
    %v895 = vpop.f32.mrf.mxu0
    %v896 = vadd.f32 %v858, %v895
    %897 = vmatmul.f32.gmra.mxu0 %v768
    %v898 = vpop.f32.mrf.mxu0
    %v899 = vadd.f32 %v858, %v898
    %900 = vmatmul.f32.gmra.mxu0 %v772
    %v901 = vpop.f32.mrf.mxu0
    %v902 = vadd.f32 %v858, %v901
    %903 = vmatmul.f32.gmra.mxu0 %v776
    %v904 = vpop.f32.mrf.mxu0
    %v905 = vadd.f32 %v858, %v904
    %906 = vmatmul.f32.gmra.mxu0 %v780
    %v907 = vpop.f32.mrf.mxu0
    %v908 = vadd.f32 %v858, %v907
    %909 = vmatmul.f32.gmra.mxu0 %v784
    %v910 = vpop.f32.mrf.mxu0
    %v911 = vadd.f32 %v858, %v910
    %912 = vmatmul.f32.gmra.mxu0 %v788
    %v913 = vpop.f32.mrf.mxu0
    %v914 = vadd.f32 %v858, %v913
    %915 = vdwg.mxu0
    %916 = vmatpush.msra.mxu0 %v823
    %917 = vmatpush.msra.mxu0 %v822
    %918 = vmatpush.msra.mxu0 %v821
    %919 = vmatpush.msra.mxu0 %v820
    %920 = vmatpush.msra.mxu0 %v819
    %921 = vmatpush.msra.mxu0 %v818
    %922 = vmatpush.msra.mxu0 %v817
    %923 = vmatpush.msra.mxu0 %v816
    %924 = vmatpush.msra.mxu0 %v815
    %925 = vmatpush.msra.mxu0 %v814
    %926 = vmatpush.msra.mxu0 %v813
    %927 = vmatpush.msra.mxu0 %v812
    %928 = vmatpush.msra.mxu0 %v811
    %929 = vmatpush.msra.mxu0 %v810
    %930 = vmatpush.msra.mxu0 %v809
    %931 = vmatpush.msra.mxu0 %v808
    %932 = vmatmul.f32.gmra.mxu0 %v741
    %v933 = vpop.f32.mrf.mxu0
    %v934 = vadd.f32 %v878, %v933
    %935 = vmatmul.f32.gmra.mxu0 %v745
    %v936 = vpop.f32.mrf.mxu0
    %v937 = vadd.f32 %v881, %v936
    %938 = vmatmul.f32.gmra.mxu0 %v749
    %v939 = vpop.f32.mrf.mxu0
    %v940 = vadd.f32 %v884, %v939
    %941 = vmatmul.f32.gmra.mxu0 %v753
    %v942 = vpop.f32.mrf.mxu0
    %v943 = vadd.f32 %v887, %v942
    %944 = vmatmul.f32.gmra.mxu0 %v757
    %v945 = vpop.f32.mrf.mxu0
    %v946 = vadd.f32 %v890, %v945
    %947 = vmatmul.f32.gmra.mxu0 %v761
    %v948 = vpop.f32.mrf.mxu0
    %v949 = vadd.f32 %v893, %v948
    %950 = vmatmul.f32.gmra.mxu0 %v765
    %v951 = vpop.f32.mrf.mxu0
    %v952 = vadd.f32 %v896, %v951
    %953 = vmatmul.f32.gmra.mxu0 %v769
    %v954 = vpop.f32.mrf.mxu0
    %v955 = vadd.f32 %v899, %v954
    %956 = vmatmul.f32.gmra.mxu0 %v773
    %v957 = vpop.f32.mrf.mxu0
    %v958 = vadd.f32 %v902, %v957
    %959 = vmatmul.f32.gmra.mxu0 %v777
    %v960 = vpop.f32.mrf.mxu0
    %v961 = vadd.f32 %v905, %v960
    %962 = vmatmul.f32.gmra.mxu0 %v781
    %v963 = vpop.f32.mrf.mxu0
    %v964 = vadd.f32 %v908, %v963
    %965 = vmatmul.f32.gmra.mxu0 %v785
    %v966 = vpop.f32.mrf.mxu0
    %v967 = vadd.f32 %v911, %v966
    %968 = vmatmul.f32.gmra.mxu0 %v789
    %v969 = vpop.f32.mrf.mxu0
    %v970 = vadd.f32 %v914, %v969
    %971 = vdwg.mxu0
    %972 = vmatpush.msra.mxu0 %v839
    %973 = vmatpush.msra.mxu0 %v838
    %974 = vmatpush.msra.mxu0 %v837
    %975 = vmatpush.msra.mxu0 %v836
    %976 = vmatpush.msra.mxu0 %v835
    %977 = vmatpush.msra.mxu0 %v834
    %978 = vmatpush.msra.mxu0 %v833
    %979 = vmatpush.msra.mxu0 %v832
    %980 = vmatpush.msra.mxu0 %v831
    %981 = vmatpush.msra.mxu0 %v830
    %982 = vmatpush.msra.mxu0 %v829
    %983 = vmatpush.msra.mxu0 %v828
    %984 = vmatpush.msra.mxu0 %v827
    %985 = vmatpush.msra.mxu0 %v826
    %986 = vmatpush.msra.mxu0 %v825
    %987 = vmatpush.msra.mxu0 %v824
    %988 = vmatmul.f32.gmra.mxu0 %v742
    %v989 = vpop.f32.mrf.mxu0
    %v990 = vadd.f32 %v934, %v989
    %991 = vmatmul.f32.gmra.mxu0 %v746
    %v992 = vpop.f32.mrf.mxu0
    %v993 = vadd.f32 %v937, %v992
    %994 = vmatmul.f32.gmra.mxu0 %v750
    %v995 = vpop.f32.mrf.mxu0
    %v996 = vadd.f32 %v940, %v995
    %997 = vmatmul.f32.gmra.mxu0 %v754
    %v998 = vpop.f32.mrf.mxu0
    %v999 = vadd.f32 %v943, %v998
    %1000 = vmatmul.f32.gmra.mxu0 %v758
    %v1001 = vpop.f32.mrf.mxu0
    %v1002 = vadd.f32 %v946, %v1001
    %1003 = vmatmul.f32.gmra.mxu0 %v762
    %v1004 = vpop.f32.mrf.mxu0
    %v1005 = vadd.f32 %v949, %v1004
    %1006 = vmatmul.f32.gmra.mxu0 %v766
    %v1007 = vpop.f32.mrf.mxu0
    %v1008 = vadd.f32 %v952, %v1007
    %1009 = vmatmul.f32.gmra.mxu0 %v770
    %v1010 = vpop.f32.mrf.mxu0
    %v1011 = vadd.f32 %v955, %v1010
    %1012 = vmatmul.f32.gmra.mxu0 %v774
    %v1013 = vpop.f32.mrf.mxu0
    %v1014 = vadd.f32 %v958, %v1013
    %1015 = vmatmul.f32.gmra.mxu0 %v778
    %v1016 = vpop.f32.mrf.mxu0
    %v1017 = vadd.f32 %v961, %v1016
    %1018 = vmatmul.f32.gmra.mxu0 %v782
    %v1019 = vpop.f32.mrf.mxu0
    %v1020 = vadd.f32 %v964, %v1019
    %1021 = vmatmul.f32.gmra.mxu0 %v786
    %v1022 = vpop.f32.mrf.mxu0
    %v1023 = vadd.f32 %v967, %v1022
    %1024 = vmatmul.f32.gmra.mxu0 %v790
    %v1025 = vpop.f32.mrf.mxu0
    %v1026 = vadd.f32 %v970, %v1025
    %1027 = vdwg.mxu0
    %1028 = vmatpush.msra.mxu0 %v855
    %1029 = vmatpush.msra.mxu0 %v854
    %1030 = vmatpush.msra.mxu0 %v853
    %1031 = vmatpush.msra.mxu0 %v852
    %1032 = vmatpush.msra.mxu0 %v851
    %1033 = vmatpush.msra.mxu0 %v850
    %1034 = vmatpush.msra.mxu0 %v849
    %1035 = vmatpush.msra.mxu0 %v848
    %1036 = vmatpush.msra.mxu0 %v847
    %1037 = vmatpush.msra.mxu0 %v846
    %1038 = vmatpush.msra.mxu0 %v845
    %1039 = vmatpush.msra.mxu0 %v844
    %1040 = vmatpush.msra.mxu0 %v843
    %1041 = vmatpush.msra.mxu0 %v842
    %1042 = vmatpush.msra.mxu0 %v841
    %1043 = vmatpush.msra.mxu0 %v840
    %1044 = vmatmul.f32.gmra.mxu0 %v743
    %v1045 = vpop.f32.mrf.mxu0
    %v1046 = vadd.f32 %v990, %v1045
    %1047 = vmatmul.f32.gmra.mxu0 %v747
    %v1048 = vpop.f32.mrf.mxu0
    %v1049 = vadd.f32 %v993, %v1048
    %1050 = vmatmul.f32.gmra.mxu0 %v751
    %v1051 = vpop.f32.mrf.mxu0
    %v1052 = vadd.f32 %v996, %v1051
    %1053 = vmatmul.f32.gmra.mxu0 %v755
    %v1054 = vpop.f32.mrf.mxu0
    %v1055 = vadd.f32 %v999, %v1054
    %1056 = vmatmul.f32.gmra.mxu0 %v759
    %v1057 = vpop.f32.mrf.mxu0
    %v1058 = vadd.f32 %v1002, %v1057
    %1059 = vmatmul.f32.gmra.mxu0 %v763
    %v1060 = vpop.f32.mrf.mxu0
    %v1061 = vadd.f32 %v1005, %v1060
    %1062 = vmatmul.f32.gmra.mxu0 %v767
    %v1063 = vpop.f32.mrf.mxu0
    %v1064 = vadd.f32 %v1008, %v1063
    %1065 = vmatmul.f32.gmra.mxu0 %v771
    %v1066 = vpop.f32.mrf.mxu0
    %v1067 = vadd.f32 %v1011, %v1066
    %1068 = vmatmul.f32.gmra.mxu0 %v775
    %v1069 = vpop.f32.mrf.mxu0
    %v1070 = vadd.f32 %v1014, %v1069
    %1071 = vmatmul.f32.gmra.mxu0 %v779
    %v1072 = vpop.f32.mrf.mxu0
    %v1073 = vadd.f32 %v1017, %v1072
    %1074 = vmatmul.f32.gmra.mxu0 %v783
    %v1075 = vpop.f32.mrf.mxu0
    %v1076 = vadd.f32 %v1020, %v1075
    %1077 = vmatmul.f32.gmra.mxu0 %v787
    %v1078 = vpop.f32.mrf.mxu0
    %v1079 = vadd.f32 %v1023, %v1078
    %1080 = vmatmul.f32.gmra.mxu0 %v791
    %v1081 = vpop.f32.mrf.mxu0
    %v1082 = vadd.f32 %v1026, %v1081
    %1083 = vdwg.mxu0
    %v1084 = vld [vmem:[%s1] sm:$0xff]
    %v1085 = vld [vmem:[%s1 + $0x8] sm:$0xff]
    %v1086 = vld [vmem:[%s1 + $0x10] sm:$0xff]
    %v1087 = vld [vmem:[%s1 + $0x18] sm:$0xff]
    %v1088 = vld [vmem:[%s1 + $0x20] sm:$0xff]
    %v1089 = vld [vmem:[%s1 + $0x28] sm:$0xff]
    %v1090 = vld [vmem:[%s1 + $0x30] sm:$0xff]
    %v1091 = vld [vmem:[%s1 + $0x38] sm:$0xff]
    %v1092 = vld [vmem:[%s1 + $0x40] sm:$0xff]
    %v1093 = vld [vmem:[%s1 + $0x48] sm:$0xff]
    %v1094 = vld [vmem:[%s1 + $0x50] sm:$0xff]
    %v1095 = vld [vmem:[%s1 + $0x58] sm:$0xff]
    %v1096 = vld [vmem:[%s1 + $0x60] sm:$0xff]
    %1098 = vset.pattern.permute.xlu0 0
    %1099 = vperm.xlu0 %1098, %v1084
    %v1100 = vpop.permute.xlu0 %1099
    %1103 = vset.pattern.permute.xlu0 0
    %1104 = vperm.xlu0 %1103, %v1085
    %v1105 = vpop.permute.xlu0 %1104
    %1108 = vset.pattern.permute.xlu0 0
    %1109 = vperm.xlu0 %1108, %v1086
    %v1110 = vpop.permute.xlu0 %1109
    %1113 = vset.pattern.permute.xlu0 0
    %1114 = vperm.xlu0 %1113, %v1087
    %v1115 = vpop.permute.xlu0 %1114
    %1118 = vset.pattern.permute.xlu0 0
    %1119 = vperm.xlu0 %1118, %v1088
    %v1120 = vpop.permute.xlu0 %1119
    %1123 = vset.pattern.permute.xlu0 0
    %1124 = vperm.xlu0 %1123, %v1089
    %v1125 = vpop.permute.xlu0 %1124
    %1128 = vset.pattern.permute.xlu0 0
    %1129 = vperm.xlu0 %1128, %v1090
    %v1130 = vpop.permute.xlu0 %1129
    %1133 = vset.pattern.permute.xlu0 0
    %1134 = vperm.xlu0 %1133, %v1091
    %v1135 = vpop.permute.xlu0 %1134
    %1138 = vset.pattern.permute.xlu0 0
    %1139 = vperm.xlu0 %1138, %v1092
    %v1140 = vpop.permute.xlu0 %1139
    %1143 = vset.pattern.permute.xlu0 0
    %1144 = vperm.xlu0 %1143, %v1093
    %v1145 = vpop.permute.xlu0 %1144
    %1148 = vset.pattern.permute.xlu0 0
    %1149 = vperm.xlu0 %1148, %v1094
    %v1150 = vpop.permute.xlu0 %1149
    %1153 = vset.pattern.permute.xlu0 0
    %1154 = vperm.xlu0 %1153, %v1095
    %v1155 = vpop.permute.xlu0 %1154
    %1158 = vset.pattern.permute.xlu0 0
    %1159 = vperm.xlu0 %1158, %v1096
    %v1160 = vpop.permute.xlu0 %1159
    %v1162 = vmul.f32 %v1046, %v1100
    %v1163 = vmul.f32 %v1049, %v1105
    %v1164 = vmul.f32 %v1052, %v1110
    %v1165 = vmul.f32 %v1055, %v1115
    %v1166 = vmul.f32 %v1058, %v1120
    %v1167 = vmul.f32 %v1061, %v1125
    %v1168 = vmul.f32 %v1064, %v1130
    %v1169 = vmul.f32 %v1067, %v1135
    %v1170 = vmul.f32 %v1070, %v1140
    %v1171 = vmul.f32 %v1073, %v1145
    %v1172 = vmul.f32 %v1076, %v1150
    %v1173 = vmul.f32 %v1079, %v1155
    %v1174 = vmul.f32 %v1082, %v1160
    %1175 = vst [vmem:[#allocation10] sm:$0xff] %v1162
    %1176 = vst [vmem:[#allocation10 + $0x8] sm:$0xff] %v1163
    %1177 = vst [vmem:[#allocation10 + $0x10] sm:$0xff] %v1164
    %1178 = vst [vmem:[#allocation10 + $0x18] sm:$0xff] %v1165
    %1179 = vst [vmem:[#allocation10 + $0x20] sm:$0xff] %v1166
    %1180 = vst [vmem:[#allocation10 + $0x28] sm:$0xff] %v1167
    %1181 = vst [vmem:[#allocation10 + $0x30] sm:$0xff] %v1168
    %1182 = vst [vmem:[#allocation10 + $0x38] sm:$0xff] %v1169
    %1183 = vst [vmem:[#allocation10 + $0x40] sm:$0xff] %v1170
    %1184 = vst [vmem:[#allocation10 + $0x48] sm:$0xff] %v1171
    %1185 = vst [vmem:[#allocation10 + $0x50] sm:$0xff] %v1172
    %1186 = vst [vmem:[#allocation10 + $0x58] sm:$0xff] %v1173
    %1187 = vst [vmem:[#allocation10 + $0x60] sm:$0xff] %v1174
    // Predicated region
    $region50: #{tpu_custom_call.1} parent=1 // pred_check
      _
    $region51: #{tpu_custom_call.1} parent=1 // pred_check_branch
      %1189 = sbr.rel (0) target = $region53
    $region52: #{tpu_custom_call.1} parent=1 // pred_region
      %1191 = vsyncadd [#allocation4], 0
      %s1192 = sshll.u32 [#allocation10], 4
      %s1193 = int_to_ptr.vmem [resolvable:$true] %s1192
      %s1194 = sshll.u32 %s8, 4
      %s1195 = int_to_ptr.hbm [resolvable:$true] %s1194
      %1200 = dma.vmem_to_hbm [thread:$0]  %s1193, 1664, %s1195, [#allocation4], 128, 128, 8
    $region53: #{tpu_custom_call.1} parent=1 // pred_fallthru
      _
    // Predicated region
    $region54: #{tpu_custom_call.1} parent=1 // pred_check
      _
    $region55: #{tpu_custom_call.1} parent=1 // pred_check_branch
      %1202 = sbr.rel (0) target = $region57
    $region56: #{tpu_custom_call.1} parent=1 // pred_region
      %1204 = dma.done [#allocation4], 1664
    $region57: #{tpu_custom_call.1} parent=1 // pred_fallthru
      _
    %1205 = vsyncpa [#allocation3], 1
    %1206 = vsyncpa [#allocation6], 1
    %1207 = vsyncpa [#allocation9], 1
    %1208 = vsyncpa [#allocation4], 1

</llo_original>
